<compile_context>
chip_gen: v7x
topology: tpu7x:2x2x1
jax: 0.10.0
libtpu: 0.0.40
codegen_flags: <defaults>
</compile_context>

<pallas_src>
import math

import jax
import jax.numpy as jnp
from jax.experimental import pallas as pl
from jax.experimental.pallas import tpu as pltpu


def _copy_kernel(x_ref, o_ref):
    # Lane-dense 2-D copy: straight vld/vst, no XLU relayout, no compute.
    o_ref[...] = x_ref[...]


# Packed sublane count per element size (sub-32-bit dtypes pack along sublanes).
_SUBLANE_UNIT = {4: 8, 2: 16, 1: 32}

# Per-tile byte target: ~2 MiB -> 4x (in+out, double-buffered) = 8 MiB, safely
# under the default scoped-VMEM limit on every generation (16 MiB v5e,
# 32 MiB v6e/v7x, and far under v7x's 64 MiB physical VMEM) while hitting the
# measured >85%-of-HBM-roofline tile-size regime.
_TARGET_TILE_BYTES = 2 << 20


def _largest_divisor_multiple(total: int, unit: int, cap: int) -> int:
    """Largest divisor of `total` that is a multiple of `unit` and <= cap (0 if none)."""
    hi = min(cap, total) // unit
    for k in range(hi, 0, -1):
        c = k * unit
        if total % c == 0:
            return c
    return 0


def _row_tile(rows: int, sub: int, row_target: int) -> int:
    """Row tile: multiple of `sub` near `row_target`, or the full `rows` if tiny."""
    if rows <= sub:
        return rows                      # block == full dim: always legal
    t = max(sub, (row_target // sub) * sub)
    return min(t, (rows // sub) * sub)


def flatten(x: jax.Array, *, donate_input: bool = False) -> jax.Array:
    """Flatten all non-batch dims: (B, ...) -> (B, prod(...)).

    Element ordering matches torch's .view(B, -1) (row-major collapse).
    NOTE: when this op is not needed as an explicit materialization / fusion
    site, prefer plain `jnp.reshape(x, (B, -1))` -- it is metadata-only in XLA
    and a copy kernel can never beat not copying.
    """
    b = x.shape[0]
    flat = math.prod(x.shape[1:]) if len(x.shape) > 1 else 1
    total = b * flat
    itemsize = jnp.dtype(x.dtype).itemsize
    sub = _SUBLANE_UNIT.get(itemsize, 8)

    cost = pl.CostEstimate(
        flops=0, transcendentals=0, bytes_accessed=2 * total * itemsize)
    io_alias = {0: 0} if donate_input else {}

    if total % 128 == 0:
        # Contiguous (rows, C) view decoupled from the output shape: C is a
        # lane-dense divisor of total, each (tr, C) block spans the FULL last
        # dim and is therefore a single contiguous HBM span.
        c = _largest_divisor_multiple(total, 128, 8192)
        rows = total // c
        tr = _row_tile(rows, sub, max(1, _TARGET_TILE_BYTES // (c * itemsize)))
        grid = (pl.cdiv(rows, tr),)

        out2d = pl.pallas_call(
            _copy_kernel,
            out_shape=jax.ShapeDtypeStruct((rows, c), x.dtype),
            grid_spec=pltpu.PrefetchScalarGridSpec(
                num_scalar_prefetch=0,
                grid=grid,
                in_specs=[pl.BlockSpec((tr, c), lambda i: (i, 0))],
                out_specs=pl.BlockSpec((tr, c), lambda i: (i, 0)),
            ),
            compiler_params=pltpu.CompilerParams(
                # Independent blocks: shard across TensorCores on multi-TC chips.
                dimension_semantics=("parallel",)),
            cost_estimate=cost,
            input_output_aliases=io_alias,
        )(jnp.reshape(x, (rows, c)))          # metadata-only view in
        return jnp.reshape(out2d, (b, flat))  # metadata-only view out

    # Fallback for totals that are not 128-divisible: keep the (B, flat) view
    # and BOUND both tile dims with a cdiv grid (masked final blocks), so VMEM
    # usage stays capped for any shape instead of emitting full-dim blocks.
    tf = flat if flat <= 2048 else 2048       # 128-divisible or full last dim
    tb = _row_tile(b, sub, max(1, _TARGET_TILE_BYTES // (tf * itemsize)))
    grid = (pl.cdiv(b, tb), pl.cdiv(flat, tf))

    return pl.pallas_call(
        _copy_kernel,
        out_shape=jax.ShapeDtypeStruct((b, flat), x.dtype),
        grid_spec=pltpu.PrefetchScalarGridSpec(
            num_scalar_prefetch=0,
            grid=grid,
            in_specs=[pl.BlockSpec((tb, tf), lambda i, j: (i, j))],
            out_specs=pl.BlockSpec((tb, tf), lambda i, j: (i, j)),
        ),
        compiler_params=pltpu.CompilerParams(
            dimension_semantics=("parallel", "parallel")),
        cost_estimate=cost,
        input_output_aliases=io_alias,
    )(jnp.reshape(x, (b, flat)))


if __name__ == "__main__":
    key = jax.random.PRNGKey(0)
    k0, k1 = jax.random.split(key)

    # Small NCHW input consistent with the module's forward.
    x = jax.random.normal(k0, (2, 4, 16, 16), dtype=jnp.float32)
    out = flatten(x)
    jax.block_until_ready(out)

    ref = x.reshape(x.shape[0], -1)
    assert out.shape == (2, 4 * 16 * 16), out.shape
    assert out.dtype == x.dtype
    assert jnp.array_equal(out, ref), "Pallas flatten mismatch vs reference"

    # Also exercise the bounded-tile fallback path (total not 128-divisible).
    y = jax.random.normal(k1, (2, 3, 50), dtype=jnp.float32)
    out_y = flatten(y)
    jax.block_until_ready(out_y)
    assert jnp.array_equal(out_y, y.reshape(2, -1)), "fallback path mismatch"

    print("KERNEL_OK")
</pallas_src>

<mosaic_0001>
module attributes {stable_mosaic.version = 11 : i64} {
  func.func @_copy_kernel(%arg0: i32, %arg1: memref<1x2048xf32, #tpu.memory_space<vmem>>, %arg2: memref<1x2048xf32, #tpu.memory_space<vmem>>) attributes {dimension_semantics = [#tpu.dimension_semantics<parallel>], iteration_bounds = array<i64: 1>, scalar_prefetch = 0 : i64, scratch_operands = 0 : i64, tpu.core_type = #tpu.core_type<tc>, window_params = [{transform_indices = @transform_0, window_bounds = array<i64: 1, 2048>}, {transform_indices = @transform_1, window_bounds = array<i64: 1, 2048>}]} {
    %c0 = arith.constant 0 : index
    %c0_0 = arith.constant 0 : index
    %0 = vector.load %arg1[%c0, %c0_0] : memref<1x2048xf32, #tpu.memory_space<vmem>>, vector<1x2048xf32>
    %c0_1 = arith.constant 0 : index
    %c0_2 = arith.constant 0 : index
    %1 = vector.load %arg2[%c0_1, %c0_2] : memref<1x2048xf32, #tpu.memory_space<vmem>>, vector<1x2048xf32>
    tpu.vector_store %arg2[%c0_1, %c0_2], %0 {strides = array<i32>} : memref<1x2048xf32, #tpu.memory_space<vmem>>, vector<1x2048xf32>,
    return
  }
  func.func @transform_0(%arg0: i32) -> (i32, i32) {
    %c0_i32 = arith.constant 0 : i32
    %c0_i32_0 = arith.constant 0 : i32
    return %arg0, %c0_i32 : i32, i32
  }
  func.func @transform_1(%arg0: i32) -> (i32, i32) {
    %c0_i32 = arith.constant 0 : i32
    %c0_i32_0 = arith.constant 0 : i32
    return %arg0, %c0_i32 : i32, i32
  }
}

</mosaic_0001>

<llo_original>
// kernel: tpu_custom_call.1
$region0: #{tpu_custom_call.1}
  #allocation0 [shape = 'u32[]', space=smem, size = 0x4, offset = 0x4, fixed_abs, tag = 'smem constant byte address 0x4 - core index']
  #allocation1 [shape = 'u32[144,128]{1,0:T(1,128)}', space=vmem, size = 0x12000, scoped, tag = 'internal scratch']
  %s0 = inlined_call_operand.hbm [shape: f32[1,2048], index: 0, kind: input, shape index: {}]
  %s1 = inlined_call_operand.hbm [shape: f32[1,2048], index: 1, kind: output, shape index: {}]
  %s2 = sld [smem:[#allocation0]]
  $region18: #{tpu_custom_call.1} parent=0
    _
  %s4 = ssub.s32 1, %s2
  %s5 = scalar_select 0, %s4, %s2
  $region1: #{tpu_custom_call.1} parent=0
    #allocation2 [shape = 'u8[8192]{0}', space=vmem, size = 0x2000, scoped, tag = 'input window, operand 0, single buffered']
    #allocation3 [shape = 's32[1]{0}', space=sflag, size = 0x4, scoped, tag = 'scoped memory for tpu_custom_call.1']
    #allocation4 [shape = 's32[1]{0}', space=sflag, size = 0x4, scoped, tag = 'scoped memory for tpu_custom_call.1']
    #allocation5 [shape = 'u8[8192]{0}', space=vmem, size = 0x2000, scoped, tag = 'output window, operand 0, single buffered']
    %6 = vsyncpa [#allocation3], 0
    %7 = vsyncpa [#allocation4], 0
    // Predicated region
    $region2: #{tpu_custom_call.1} parent=1 // pred_check
      _
    $region3: #{tpu_custom_call.1} parent=1 // pred_check_branch
      %9 = sbr.rel (0) target = $region5
    $region4: #{tpu_custom_call.1} parent=1 // pred_region
      %s11 = ssub.s32 256, 256
      %12 = vsyncadd [#allocation3], %s11
      %s14 = sshll.u32 [#allocation2], 4
      %s15 = int_to_ptr.vmem [resolvable:$true] %s14
      %17 = dma.hbm_to_vmem [thread:$0]  %s0, 256, %s15, [#allocation3]
    $region5: #{tpu_custom_call.1} parent=1 // pred_fallthru
      _
    // Predicated region
    $region6: #{tpu_custom_call.1} parent=1 // pred_check
      _
    $region7: #{tpu_custom_call.1} parent=1 // pred_check_branch
      %19 = sbr.rel (0) target = $region9
    $region8: #{tpu_custom_call.1} parent=1 // pred_region
      %20 = dma.done [#allocation3], 256
    $region9: #{tpu_custom_call.1} parent=1 // pred_fallthru
      _
    %v21 = vld [vmem:[#allocation2] sm:$0xff]
    %v22 = vld [vmem:[#allocation2 + $0x8] sm:$0xff]
    %23 = vst [vmem:[#allocation5] sm:$0xff] %v21
    %24 = vst [vmem:[#allocation5 + $0x8] sm:$0xff] %v22
    // Predicated region
    $region10: #{tpu_custom_call.1} parent=1 // pred_check
      _
    $region11: #{tpu_custom_call.1} parent=1 // pred_check_branch
      %26 = sbr.rel (0) target = $region13
    $region12: #{tpu_custom_call.1} parent=1 // pred_region
      %s28 = ssub.s32 256, 256
      %29 = vsyncadd [#allocation4], %s28
      %s31 = sshll.u32 [#allocation5], 4
      %s32 = int_to_ptr.vmem [resolvable:$true] %s31
      %34 = dma.vmem_to_hbm [thread:$0]  %s32, 256, %s1, [#allocation4]
    $region13: #{tpu_custom_call.1} parent=1 // pred_fallthru
      _
    // Predicated region
    $region14: #{tpu_custom_call.1} parent=1 // pred_check
      _
    $region15: #{tpu_custom_call.1} parent=1 // pred_check_branch
      %36 = sbr.rel (0) target = $region17
    $region16: #{tpu_custom_call.1} parent=1 // pred_region
      %37 = dma.done [#allocation4], 256
    $region17: #{tpu_custom_call.1} parent=1 // pred_fallthru
      _
    %38 = vsyncpa [#allocation3], 1
    %39 = vsyncpa [#allocation4], 1

</llo_original>
